<compile_context>
chip_gen: v7x
topology: tpu7x:2x2x1
jax: 0.10.0
libtpu: 0.0.40
codegen_flags: <defaults>
</compile_context>

<pallas_src>
import math
import jax
import jax.numpy as jnp
from jax import lax
from jax.experimental import pallas as pl
from jax.experimental.pallas import tpu as pltpu  # noqa: F401  (TPU backend assumed)


def _net_kernel(target_ref, age_ref,
                w_gnn_ref, b_gnn_ref,
                w_t_ref, b_t_ref,
                w_lt_ref, b_l_ref,
                outw_t_ref, w_fc3_ref, bias_ref,
                out_ref):
    f32, bf16 = jnp.float32, jnp.bfloat16

    # gnn (LinTrans, 1 linear layer); rows were already gathered to the F needed nodes.
    # TODO(synk): LinTrans is not defined in the source; modeled as one nn.Linear(768, embSize).
    age_e = (jnp.dot(age_ref[...], w_gnn_ref[...], preferred_element_type=f32)
             + b_gnn_ref[...])                                          # [F, Edim] f32

    # h = tanh(prj_T(target))
    h = jnp.tanh(jnp.dot(target_ref[...], w_t_ref[...], preferred_element_type=f32)
                 + b_t_ref[...])                                        # [B, H] f32

    # E^T = tanh(prj_L(age_e))^T, computed directly in [H, F] layout with an NT
    # dot_general (contract last dims of both operands) -> no XLU transpose anywhere.
    e_t = jnp.tanh(
        lax.dot_general(w_lt_ref[...], age_e.astype(bf16),
                        dimension_numbers=(((1,), (1,)), ((), ())),
                        preferred_element_type=f32)
        + b_l_ref[...])                                                 # [H, F] f32
    # TODO(synk): Dropout(p=0.2) on E is train-time stochastic; eval-mode identity here.

    # Fused output heads: rhs = [ E^T * outW^T | W_fc3 | 0 ]  -> [H, 128]
    ew_t = e_t * outw_t_ref[...]                                        # [H, F] f32
    rhs = jnp.concatenate([ew_t, w_fc3_ref[...].astype(f32)], axis=-1)  # [H, 128] f32

    # Single MXU pass + single lane-dense [B, 128] store covering both heads.
    out_ref[...] = (jnp.dot(h.astype(bf16), rhs.astype(bf16),
                            preferred_element_type=f32)
                    + bias_ref[...])                                    # [B, 128] f32


def _full_spec(shape):
    nd = len(shape)
    return pl.BlockSpec(shape, lambda *_: (0,) * nd)


def net_forward(target, age_inx, emb2fr, params):
    """target: [B, Din] f32, age_inx: [N, 768] f32, emb2fr: [F] int32 (endX)."""
    f32, bf16 = jnp.float32, jnp.bfloat16

    B, Din = target.shape
    Edim = params["w_gnn"].shape[1]
    H = params["w_t"].shape[1]
    F = params["outw"].shape[0]
    FE = params["w_fc3"].shape[1]
    OUT_LANES = 128                      # lane-dense fused output: [frame | frameE | 0-pad]
    assert F + FE <= OUT_LANES

    # Gather the F needed node rows BEFORE the gnn linear (selection commutes with the
    # affine gnn) -> the kernel never touches the full AGE_inx.
    age_sel = jnp.take(age_inx, emb2fr, axis=0)                         # [F, 768]

    # Constant-operand layout prep (done once in XLA, free for the kernel):
    w_lt = params["w_l"].T                                              # [H, Edim]
    outw_t = params["outw"].T                                           # [H, F]
    b_l_col = params["b_l"].reshape(H, 1)                               # [H, 1]
    w_fc3_pad = jnp.concatenate(
        [params["w_fc3"], jnp.zeros((H, OUT_LANES - F - FE), f32)], axis=1)   # [H, 128-F]
    bias_pad = jnp.concatenate(
        [params["outb"], params["b_fc3"],
         jnp.zeros((1, OUT_LANES - F - FE), f32)], axis=1)              # [1, 128]

    # bf16 for all MXU operands (halves HBM->VMEM bytes); biases / VPU math stay f32.
    inputs = (target.astype(bf16), age_sel.astype(bf16),
              params["w_gnn"].astype(bf16), params["b_gnn"].astype(f32),
              params["w_t"].astype(bf16), params["b_t"].astype(f32),
              w_lt.astype(bf16), b_l_col.astype(f32),
              outw_t.astype(f32), w_fc3_pad.astype(bf16), bias_pad.astype(f32))

    flops = 2 * (F * 768 * Edim + B * Din * H + H * Edim * F + B * H * OUT_LANES)
    transcendentals = B * H + H * F
    bytes_accessed = sum(int(x.size) * x.dtype.itemsize for x in inputs) \
        + B * OUT_LANES * 4

    fused = pl.pallas_call(
        _net_kernel,
        grid=(),                         # tiny problem: single invocation, all tiles in VMEM
        in_specs=[_full_spec(x.shape) for x in inputs],
        out_specs=_full_spec((B, OUT_LANES)),
        out_shape=jax.ShapeDtypeStruct((B, OUT_LANES), f32),
        cost_estimate=pl.CostEstimate(flops=flops,
                                      transcendentals=transcendentals,
                                      bytes_accessed=bytes_accessed),
    )(*inputs)

    return fused[:, :F], fused[:, F:F + FE]


if __name__ == "__main__":
    # Small shapes consistent with the module:
    #   B=8 targets, Din=inpShape[-1]=64, N=48 graph nodes with 768-d features,
    #   embSize=32, hidden=256 (fixed), frmCount F=16, FEcount=24.
    B, Din, N, E, H, F, FE = 8, 64, 48, 32, 256, 16, 24

    key = jax.random.PRNGKey(0)
    keys = jax.random.split(key, 12)

    def lin_init(k, fan_in, shape):
        bound = 1.0 / math.sqrt(fan_in)
        return jax.random.uniform(k, shape, jnp.float32, -bound, bound)

    params = dict(
        w_gnn=lin_init(keys[0], 768, (768, E)), b_gnn=lin_init(keys[1], 768, (1, E)),
        w_t=lin_init(keys[2], Din, (Din, H)),   b_t=lin_init(keys[3], Din, (1, H)),
        w_l=lin_init(keys[4], E, (E, H)),       b_l=lin_init(keys[5], E, (1, H)),
        outw=lin_init(keys[6], H, (F, H)),      outb=lin_init(keys[7], H, (1, F)),
        w_fc3=lin_init(keys[8], H, (H, FE)),    b_fc3=lin_init(keys[9], H, (1, FE)),
    )

    target = jax.random.normal(keys[10], (B, Din), jnp.float32)
    age_inx = jax.random.normal(keys[11], (N, 768), jnp.float32)
    emb2fr = (jnp.arange(F, dtype=jnp.int32) * 3) % N                   # self.endX

    frame, fe = jax.block_until_ready(net_forward(target, age_inx, emb2fr, params))

    # Pure-JAX f32 reference (kernel matmuls run in bf16 with f32 accumulation,
    # hence the moderately loose tolerance).
    age_e = age_inx @ params["w_gnn"] + params["b_gnn"]
    h_ref = jnp.tanh(target @ params["w_t"] + params["b_t"])
    E_ref = jnp.tanh(age_e[emb2fr] @ params["w_l"] + params["b_l"])
    ref_frame = h_ref @ (E_ref * params["outw"]).T + params["outb"]
    ref_fe = h_ref @ params["w_fc3"] + params["b_fc3"]

    assert frame.shape == (B, F) and fe.shape == (B, FE)
    assert jnp.allclose(frame, ref_frame, rtol=5e-2, atol=5e-2)
    assert jnp.allclose(fe, ref_fe, rtol=5e-2, atol=5e-2)

    print("KERNEL_OK")
</pallas_src>

<mosaic_0001>
module attributes {stable_mosaic.version = 11 : i64} {
  func.func @_net_kernel(%arg0: memref<8x64xbf16, #tpu.memory_space<vmem>>, %arg1: memref<16x768xbf16, #tpu.memory_space<vmem>>, %arg2: memref<768x32xbf16, #tpu.memory_space<vmem>>, %arg3: memref<1x32xf32, #tpu.memory_space<vmem>>, %arg4: memref<64x256xbf16, #tpu.memory_space<vmem>>, %arg5: memref<1x256xf32, #tpu.memory_space<vmem>>, %arg6: memref<256x32xbf16, #tpu.memory_space<vmem>>, %arg7: memref<256x1xf32, #tpu.memory_space<vmem>>, %arg8: memref<256x16xf32, #tpu.memory_space<vmem>>, %arg9: memref<256x112xbf16, #tpu.memory_space<vmem>>, %arg10: memref<1x128xf32, #tpu.memory_space<vmem>>, %arg11: memref<8x128xf32, #tpu.memory_space<vmem>>) attributes {dimension_semantics = [], scalar_prefetch = 0 : i64, scratch_operands = 0 : i64, tpu.core_type = #tpu.core_type<tc>} {
    %c0 = arith.constant 0 : index
    %c0_0 = arith.constant 0 : index
    %0 = vector.load %arg1[%c0, %c0_0] : memref<16x768xbf16, #tpu.memory_space<vmem>>, vector<16x768xbf16>
    %c0_1 = arith.constant 0 : index
    %c0_2 = arith.constant 0 : index
    %1 = vector.load %arg2[%c0_1, %c0_2] : memref<768x32xbf16, #tpu.memory_space<vmem>>, vector<768x32xbf16>
    %cst = arith.constant dense<0.000000e+00> : vector<16x32xf32>
    %2 = tpu.matmul %0, %1, %cst {dimension_numbers = #tpu.dot_dimension_numbers<[1], [0], [0], [1], [0, 0, 1, 1], [], []>} : vector<16x768xbf16>, vector<768x32xbf16>, vector<16x32xf32> -> vector<16x32xf32>
    %c0_3 = arith.constant 0 : index
    %c0_4 = arith.constant 0 : index
    %3 = vector.load %arg3[%c0_3, %c0_4] : memref<1x32xf32, #tpu.memory_space<vmem>>, vector<1x32xf32>
    %4 = vector.broadcast %3 : vector<1x32xf32> to vector<16x32xf32>
    %5 = arith.addf %2, %4 : vector<16x32xf32>
    %c0_5 = arith.constant 0 : index
    %c0_6 = arith.constant 0 : index
    %6 = vector.load %arg0[%c0_5, %c0_6] : memref<8x64xbf16, #tpu.memory_space<vmem>>, vector<8x64xbf16>
    %c0_7 = arith.constant 0 : index
    %c0_8 = arith.constant 0 : index
    %7 = vector.load %arg4[%c0_7, %c0_8] : memref<64x256xbf16, #tpu.memory_space<vmem>>, vector<64x256xbf16>
    %cst_9 = arith.constant dense<0.000000e+00> : vector<8x256xf32>
    %8 = tpu.matmul %6, %7, %cst_9 {dimension_numbers = #tpu.dot_dimension_numbers<[1], [0], [0], [1], [0, 0, 1, 1], [], []>} : vector<8x64xbf16>, vector<64x256xbf16>, vector<8x256xf32> -> vector<8x256xf32>
    %c0_10 = arith.constant 0 : index
    %c0_11 = arith.constant 0 : index
    %9 = vector.load %arg5[%c0_10, %c0_11] : memref<1x256xf32, #tpu.memory_space<vmem>>, vector<1x256xf32>
    %10 = vector.broadcast %9 : vector<1x256xf32> to vector<8x256xf32>
    %11 = arith.addf %8, %10 : vector<8x256xf32>
    %12 = math.tanh %11 : vector<8x256xf32>
    %c0_12 = arith.constant 0 : index
    %c0_13 = arith.constant 0 : index
    %13 = vector.load %arg6[%c0_12, %c0_13] : memref<256x32xbf16, #tpu.memory_space<vmem>>, vector<256x32xbf16>
    %14 = arith.truncf %5 : vector<16x32xf32> to vector<16x32xbf16>
    %cst_14 = arith.constant dense<0.000000e+00> : vector<256x16xf32>
    %15 = tpu.matmul %13, %14, %cst_14 {dimension_numbers = #tpu.dot_dimension_numbers<[1], [1], [0], [0], [0, 0, 1, 0], [], []>} : vector<256x32xbf16>, vector<16x32xbf16>, vector<256x16xf32> -> vector<256x16xf32>
    %c0_15 = arith.constant 0 : index
    %c0_16 = arith.constant 0 : index
    %16 = vector.load %arg7[%c0_15, %c0_16] : memref<256x1xf32, #tpu.memory_space<vmem>>, vector<256x1xf32>
    %17 = vector.broadcast %16 : vector<256x1xf32> to vector<256x16xf32>
    %18 = arith.addf %15, %17 : vector<256x16xf32>
    %19 = math.tanh %18 : vector<256x16xf32>
    %c0_17 = arith.constant 0 : index
    %c0_18 = arith.constant 0 : index
    %20 = vector.load %arg8[%c0_17, %c0_18] : memref<256x16xf32, #tpu.memory_space<vmem>>, vector<256x16xf32>
    %21 = arith.mulf %19, %20 : vector<256x16xf32>
    %c0_19 = arith.constant 0 : index
    %c0_20 = arith.constant 0 : index
    %22 = vector.load %arg9[%c0_19, %c0_20] : memref<256x112xbf16, #tpu.memory_space<vmem>>, vector<256x112xbf16>
    %23 = arith.extf %22 : vector<256x112xbf16> to vector<256x112xf32>
    %24 = tpu.concatenate %21, %23 in 1 : vector<256x16xf32>, vector<256x112xf32> -> vector<256x128xf32>
    %25 = arith.truncf %12 : vector<8x256xf32> to vector<8x256xbf16>
    %26 = arith.truncf %24 : vector<256x128xf32> to vector<256x128xbf16>
    %cst_21 = arith.constant dense<0.000000e+00> : vector<8x128xf32>
    %27 = tpu.matmul %25, %26, %cst_21 {dimension_numbers = #tpu.dot_dimension_numbers<[1], [0], [0], [1], [0, 0, 1, 1], [], []>} : vector<8x256xbf16>, vector<256x128xbf16>, vector<8x128xf32> -> vector<8x128xf32>
    %c0_22 = arith.constant 0 : index
    %c0_23 = arith.constant 0 : index
    %28 = vector.load %arg10[%c0_22, %c0_23] : memref<1x128xf32, #tpu.memory_space<vmem>>, vector<1x128xf32>
    %29 = vector.broadcast %28 : vector<1x128xf32> to vector<8x128xf32>
    %30 = arith.addf %27, %29 : vector<8x128xf32>
    %c0_24 = arith.constant 0 : index
    %c0_25 = arith.constant 0 : index
    %31 = vector.load %arg11[%c0_24, %c0_25] : memref<8x128xf32, #tpu.memory_space<vmem>>, vector<8x128xf32>
    tpu.vector_store %arg11[%c0_24, %c0_25], %30 {strides = array<i32>} : memref<8x128xf32, #tpu.memory_space<vmem>>, vector<8x128xf32>,
    return
  }
}

</mosaic_0001>

<llo_original>
// kernel: tpu_custom_call.1
$region0: #{tpu_custom_call.1}
  #allocation0 [shape = 'u32[]', space=smem, size = 0x4, offset = 0x4, fixed_abs, tag = 'smem constant byte address 0x4 - core index']
  #allocation1 [shape = 'u32[144,128]{1,0:T(1,128)}', space=vmem, size = 0x12000, scoped, tag = 'internal scratch']
  %s0 = inlined_call_operand.vmem [shape: bf16[8,64], index: 0, kind: input, shape index: {}]
  %s1 = inlined_call_operand.vmem [shape: bf16[16,768], index: 1, kind: input, shape index: {}]
  %s2 = inlined_call_operand.vmem [shape: bf16[768,32], index: 2, kind: input, shape index: {}]
  %s3 = inlined_call_operand.vmem [shape: f32[1,32], index: 3, kind: input, shape index: {}]
  %s4 = inlined_call_operand.vmem [shape: bf16[64,256], index: 4, kind: input, shape index: {}]
  %s5 = inlined_call_operand.vmem [shape: f32[1,256], index: 5, kind: input, shape index: {}]
  %s6 = inlined_call_operand.vmem [shape: bf16[256,32], index: 6, kind: input, shape index: {}]
  %s7 = inlined_call_operand.vmem [shape: f32[256,1], index: 7, kind: input, shape index: {}]
  %s8 = inlined_call_operand.vmem [shape: f32[256,16], index: 8, kind: input, shape index: {}]
  %s9 = inlined_call_operand.vmem [shape: bf16[256,112], index: 9, kind: input, shape index: {}]
  %s10 = inlined_call_operand.vmem [shape: f32[1,128], index: 10, kind: input, shape index: {}]
  %s11 = inlined_call_operand.hbm [shape: f32[8,128], index: 11, kind: output, shape index: {}]
  %s12 = sld [smem:[#allocation0]]
  $region54: #{tpu_custom_call.1} parent=0
    _
  %s14 = ssub.s32 1, %s12
  %s15 = scalar_select 0, %s14, %s12
  $region1: #{tpu_custom_call.1} parent=0
    #allocation2 [shape = 'u8[4096]{0}', space=vmem, size = 0x1000, scoped, tag = 'output window, operand 0, single buffered']
    #allocation3 [shape = 's32[1]{0}', space=sflag, size = 0x4, scoped, tag = 'scoped memory for tpu_custom_call.1']
    %16 = vsyncpa [#allocation3], 0
    // Predicated region
    $region2: #{tpu_custom_call.1} parent=1 // pred_check
      _
    $region3: #{tpu_custom_call.1} parent=1 // pred_check_branch
      %18 = sbr.rel (0) target = $region5
    $region4: #{tpu_custom_call.1} parent=1 // pred_region
      _
    $region5: #{tpu_custom_call.1} parent=1 // pred_fallthru
      _
    // Predicated region
    $region6: #{tpu_custom_call.1} parent=1 // pred_check
      _
    $region7: #{tpu_custom_call.1} parent=1 // pred_check_branch
      %20 = sbr.rel (0) target = $region9
    $region8: #{tpu_custom_call.1} parent=1 // pred_region
      _
    $region9: #{tpu_custom_call.1} parent=1 // pred_fallthru
      _
    // Predicated region
    $region10: #{tpu_custom_call.1} parent=1 // pred_check
      _
    $region11: #{tpu_custom_call.1} parent=1 // pred_check_branch
      %22 = sbr.rel (0) target = $region13
    $region12: #{tpu_custom_call.1} parent=1 // pred_region
      _
    $region13: #{tpu_custom_call.1} parent=1 // pred_fallthru
      _
    // Predicated region
    $region14: #{tpu_custom_call.1} parent=1 // pred_check
      _
    $region15: #{tpu_custom_call.1} parent=1 // pred_check_branch
      %24 = sbr.rel (0) target = $region17
    $region16: #{tpu_custom_call.1} parent=1 // pred_region
      _
    $region17: #{tpu_custom_call.1} parent=1 // pred_fallthru
      _
    // Predicated region
    $region18: #{tpu_custom_call.1} parent=1 // pred_check
      _
    $region19: #{tpu_custom_call.1} parent=1 // pred_check_branch
      %26 = sbr.rel (0) target = $region21
    $region20: #{tpu_custom_call.1} parent=1 // pred_region
      _
    $region21: #{tpu_custom_call.1} parent=1 // pred_fallthru
      _
    // Predicated region
    $region22: #{tpu_custom_call.1} parent=1 // pred_check
      _
    $region23: #{tpu_custom_call.1} parent=1 // pred_check_branch
      %28 = sbr.rel (0) target = $region25
    $region24: #{tpu_custom_call.1} parent=1 // pred_region
      _
    $region25: #{tpu_custom_call.1} parent=1 // pred_fallthru
      _
    // Predicated region
    $region26: #{tpu_custom_call.1} parent=1 // pred_check
      _
    $region27: #{tpu_custom_call.1} parent=1 // pred_check_branch
      %30 = sbr.rel (0) target = $region29
    $region28: #{tpu_custom_call.1} parent=1 // pred_region
      _
    $region29: #{tpu_custom_call.1} parent=1 // pred_fallthru
      _
    // Predicated region
    $region30: #{tpu_custom_call.1} parent=1 // pred_check
      _
    $region31: #{tpu_custom_call.1} parent=1 // pred_check_branch
      %32 = sbr.rel (0) target = $region33
    $region32: #{tpu_custom_call.1} parent=1 // pred_region
      _
    $region33: #{tpu_custom_call.1} parent=1 // pred_fallthru
      _
    // Predicated region
    $region34: #{tpu_custom_call.1} parent=1 // pred_check
      _
    $region35: #{tpu_custom_call.1} parent=1 // pred_check_branch
      %34 = sbr.rel (0) target = $region37
    $region36: #{tpu_custom_call.1} parent=1 // pred_region
      _
    $region37: #{tpu_custom_call.1} parent=1 // pred_fallthru
      _
    // Predicated region
    $region38: #{tpu_custom_call.1} parent=1 // pred_check
      _
    $region39: #{tpu_custom_call.1} parent=1 // pred_check_branch
      %36 = sbr.rel (0) target = $region41
    $region40: #{tpu_custom_call.1} parent=1 // pred_region
      _
    $region41: #{tpu_custom_call.1} parent=1 // pred_fallthru
      _
    // Predicated region
    $region42: #{tpu_custom_call.1} parent=1 // pred_check
      _
    $region43: #{tpu_custom_call.1} parent=1 // pred_check_branch
      %38 = sbr.rel (0) target = $region45
    $region44: #{tpu_custom_call.1} parent=1 // pred_region
      _
    $region45: #{tpu_custom_call.1} parent=1 // pred_fallthru
      _
    %v40 = vld [vmem:[%s1] sm:$0xff]
    %v41 = vld [vmem:[%s1 + $0x8] sm:$0xff]
    %v42 = vld [vmem:[%s1 + $0x10] sm:$0xff]
    %v43 = vld [vmem:[%s1 + $0x18] sm:$0xff]
    %v44 = vld [vmem:[%s1 + $0x20] sm:$0xff]
    %v45 = vld [vmem:[%s1 + $0x28] sm:$0xff]
    %v46 = vld [vmem:[%s2] sm:$0xf]
    %v47 = vld [vmem:[%s2 + $0x4] sm:$0xf]
    %v48 = vld [vmem:[%s2 + $0x8] sm:$0xf]
    %v49 = vld [vmem:[%s2 + $0xc] sm:$0xf]
    %v50 = vld [vmem:[%s2 + $0x10] sm:$0xf]
    %v51 = vld [vmem:[%s2 + $0x14] sm:$0xf]
    %v52 = vld [vmem:[%s2 + $0x18] sm:$0xf]
    %v53 = vld [vmem:[%s2 + $0x1c] sm:$0xf]
    %v54 = vld [vmem:[%s2 + $0x20] sm:$0xf]
    %v55 = vld [vmem:[%s2 + $0x24] sm:$0xf]
    %v56 = vld [vmem:[%s2 + $0x28] sm:$0xf]
    %v57 = vld [vmem:[%s2 + $0x2c] sm:$0xf]
    %v58 = vld [vmem:[%s2 + $0x30] sm:$0xf]
    %v59 = vld [vmem:[%s2 + $0x34] sm:$0xf]
    %v60 = vld [vmem:[%s2 + $0x38] sm:$0xf]
    %v61 = vld [vmem:[%s2 + $0x3c] sm:$0xf]
    %v62 = vld [vmem:[%s2 + $0x40] sm:$0xf]
    %v63 = vld [vmem:[%s2 + $0x44] sm:$0xf]
    %v64 = vld [vmem:[%s2 + $0x48] sm:$0xf]
    %v65 = vld [vmem:[%s2 + $0x4c] sm:$0xf]
    %v66 = vld [vmem:[%s2 + $0x50] sm:$0xf]
    %v67 = vld [vmem:[%s2 + $0x54] sm:$0xf]
    %v68 = vld [vmem:[%s2 + $0x58] sm:$0xf]
    %v69 = vld [vmem:[%s2 + $0x5c] sm:$0xf]
    %v70 = vld [vmem:[%s2 + $0x60] sm:$0xf]
    %v71 = vld [vmem:[%s2 + $0x64] sm:$0xf]
    %v72 = vld [vmem:[%s2 + $0x68] sm:$0xf]
    %v73 = vld [vmem:[%s2 + $0x6c] sm:$0xf]
    %v74 = vld [vmem:[%s2 + $0x70] sm:$0xf]
    %v75 = vld [vmem:[%s2 + $0x74] sm:$0xf]
    %v76 = vld [vmem:[%s2 + $0x78] sm:$0xf]
    %v77 = vld [vmem:[%s2 + $0x7c] sm:$0xf]
    %v78 = vld [vmem:[%s2 + $0x80] sm:$0xf]
    %v79 = vld [vmem:[%s2 + $0x84] sm:$0xf]
    %v80 = vld [vmem:[%s2 + $0x88] sm:$0xf]
    %v81 = vld [vmem:[%s2 + $0x8c] sm:$0xf]
    %v82 = vld [vmem:[%s2 + $0x90] sm:$0xf]
    %v83 = vld [vmem:[%s2 + $0x94] sm:$0xf]
    %v84 = vld [vmem:[%s2 + $0x98] sm:$0xf]
    %v85 = vld [vmem:[%s2 + $0x9c] sm:$0xf]
    %v86 = vld [vmem:[%s2 + $0xa0] sm:$0xf]
    %v87 = vld [vmem:[%s2 + $0xa4] sm:$0xf]
    %v88 = vld [vmem:[%s2 + $0xa8] sm:$0xf]
    %v89 = vld [vmem:[%s2 + $0xac] sm:$0xf]
    %v90 = vld [vmem:[%s2 + $0xb0] sm:$0xf]
    %v91 = vld [vmem:[%s2 + $0xb4] sm:$0xf]
    %v92 = vld [vmem:[%s2 + $0xb8] sm:$0xf]
    %v93 = vld [vmem:[%s2 + $0xbc] sm:$0xf]
    %v94 = vld [vmem:[%s2 + $0xc0] sm:$0xf]
    %v95 = vld [vmem:[%s2 + $0xc4] sm:$0xf]
    %v96 = vld [vmem:[%s2 + $0xc8] sm:$0xf]
    %v97 = vld [vmem:[%s2 + $0xcc] sm:$0xf]
    %v98 = vld [vmem:[%s2 + $0xd0] sm:$0xf]
    %v99 = vld [vmem:[%s2 + $0xd4] sm:$0xf]
    %v100 = vld [vmem:[%s2 + $0xd8] sm:$0xf]
    %v101 = vld [vmem:[%s2 + $0xdc] sm:$0xf]
    %v102 = vld [vmem:[%s2 + $0xe0] sm:$0xf]
    %v103 = vld [vmem:[%s2 + $0xe4] sm:$0xf]
    %v104 = vld [vmem:[%s2 + $0xe8] sm:$0xf]
    %v105 = vld [vmem:[%s2 + $0xec] sm:$0xf]
    %v106 = vld [vmem:[%s2 + $0xf0] sm:$0xf]
    %v107 = vld [vmem:[%s2 + $0xf4] sm:$0xf]
    %v108 = vld [vmem:[%s2 + $0xf8] sm:$0xf]
    %v109 = vld [vmem:[%s2 + $0xfc] sm:$0xf]
    %v110 = vld [vmem:[%s2 + $0x100] sm:$0xf]
    %v111 = vld [vmem:[%s2 + $0x104] sm:$0xf]
    %v112 = vld [vmem:[%s2 + $0x108] sm:$0xf]
    %v113 = vld [vmem:[%s2 + $0x10c] sm:$0xf]
    %v114 = vld [vmem:[%s2 + $0x110] sm:$0xf]
    %v115 = vld [vmem:[%s2 + $0x114] sm:$0xf]
    %v116 = vld [vmem:[%s2 + $0x118] sm:$0xf]
    %v117 = vld [vmem:[%s2 + $0x11c] sm:$0xf]
    %v118 = vld [vmem:[%s2 + $0x120] sm:$0xf]
    %v119 = vld [vmem:[%s2 + $0x124] sm:$0xf]
    %v120 = vld [vmem:[%s2 + $0x128] sm:$0xf]
    %v121 = vld [vmem:[%s2 + $0x12c] sm:$0xf]
    %v122 = vld [vmem:[%s2 + $0x130] sm:$0xf]
    %v123 = vld [vmem:[%s2 + $0x134] sm:$0xf]
    %v124 = vld [vmem:[%s2 + $0x138] sm:$0xf]
    %v125 = vld [vmem:[%s2 + $0x13c] sm:$0xf]
    %v126 = vld [vmem:[%s2 + $0x140] sm:$0xf]
    %v127 = vld [vmem:[%s2 + $0x144] sm:$0xf]
    %v128 = vld [vmem:[%s2 + $0x148] sm:$0xf]
    %v129 = vld [vmem:[%s2 + $0x14c] sm:$0xf]
    %v130 = vld [vmem:[%s2 + $0x150] sm:$0xf]
    %v131 = vld [vmem:[%s2 + $0x154] sm:$0xf]
    %v132 = vld [vmem:[%s2 + $0x158] sm:$0xf]
    %v133 = vld [vmem:[%s2 + $0x15c] sm:$0xf]
    %v134 = vld [vmem:[%s2 + $0x160] sm:$0xf]
    %v135 = vld [vmem:[%s2 + $0x164] sm:$0xf]
    %v136 = vld [vmem:[%s2 + $0x168] sm:$0xf]
    %v137 = vld [vmem:[%s2 + $0x16c] sm:$0xf]
    %v138 = vld [vmem:[%s2 + $0x170] sm:$0xf]
    %v139 = vld [vmem:[%s2 + $0x174] sm:$0xf]
    %v140 = vld [vmem:[%s2 + $0x178] sm:$0xf]
    %v141 = vld [vmem:[%s2 + $0x17c] sm:$0xf]
    %v142 = vld [vmem:[%s3] sm:$0x1]
    %v144 = vlaneseq
    %v145 = vshrl.u32 %v144, 7
    %v146 = vsub.s32 0, %v145
    %v147 = vrot.slane %v142, %v146
    %v155 = vunpack.c.l.b16 %v40
    %v156 = vunpack.c.h.b16 %v40
    %v157 = vunpack.c.l.b16 %v41
    %v158 = vunpack.c.h.b16 %v41
    %v159 = vunpack.c.l.b16 %v42
    %v160 = vunpack.c.h.b16 %v42
    %v161 = vunpack.c.l.b16 %v43
    %v162 = vunpack.c.h.b16 %v43
    %v163 = vunpack.c.l.b16 %v44
    %v164 = vunpack.c.h.b16 %v44
    %v165 = vunpack.c.l.b16 %v45
    %v166 = vunpack.c.h.b16 %v45
    %v167 = vpack.c.b16 %v161, %v155
    %v168 = vpack.c.b16 %v162, %v156
    %v169 = vpack.c.b16 %v163, %v157
    %v170 = vpack.c.b16 %v164, %v158
    %v171 = vpack.c.b16 %v165, %v159
    %v172 = vpack.c.b16 %v166, %v160
    %v275 = vunpack.c.l.b16 %v46
    %v276 = vunpack.c.l.b16 %v47
    %v277 = vunpack.c.l.b16 %v48
    %v278 = vunpack.c.l.b16 %v49
    %v279 = vunpack.c.l.b16 %v50
    %v280 = vunpack.c.l.b16 %v51
    %v281 = vunpack.c.l.b16 %v52
    %v282 = vunpack.c.l.b16 %v53
    %v283 = vunpack.c.l.b16 %v54
    %v284 = vunpack.c.l.b16 %v55
    %v285 = vunpack.c.l.b16 %v56
    %v286 = vunpack.c.l.b16 %v57
    %v287 = vunpack.c.l.b16 %v58
    %v288 = vunpack.c.l.b16 %v59
    %v289 = vunpack.c.l.b16 %v60
    %v290 = vunpack.c.l.b16 %v61
    %v291 = vunpack.c.l.b16 %v62
    %v292 = vunpack.c.l.b16 %v63
    %v293 = vunpack.c.l.b16 %v64
    %v294 = vunpack.c.l.b16 %v65
    %v295 = vunpack.c.l.b16 %v66
    %v296 = vunpack.c.l.b16 %v67
    %v297 = vunpack.c.l.b16 %v68
    %v298 = vunpack.c.l.b16 %v69
    %v299 = vunpack.c.l.b16 %v70
    %v300 = vunpack.c.l.b16 %v71
    %v301 = vunpack.c.l.b16 %v72
    %v302 = vunpack.c.l.b16 %v73
    %v303 = vunpack.c.l.b16 %v74
    %v304 = vunpack.c.l.b16 %v75
    %v305 = vunpack.c.l.b16 %v76
    %v306 = vunpack.c.l.b16 %v77
    %v307 = vunpack.c.l.b16 %v78
    %v308 = vunpack.c.l.b16 %v79
    %v309 = vunpack.c.l.b16 %v80
    %v310 = vunpack.c.l.b16 %v81
    %v311 = vunpack.c.l.b16 %v82
    %v312 = vunpack.c.l.b16 %v83
    %v313 = vunpack.c.l.b16 %v84
    %v314 = vunpack.c.l.b16 %v85
    %v315 = vunpack.c.l.b16 %v86
    %v316 = vunpack.c.l.b16 %v87
    %v317 = vunpack.c.l.b16 %v88
    %v318 = vunpack.c.l.b16 %v89
    %v319 = vunpack.c.l.b16 %v90
    %v320 = vunpack.c.l.b16 %v91
    %v321 = vunpack.c.l.b16 %v92
    %v322 = vunpack.c.l.b16 %v93
    %v323 = vunpack.c.l.b16 %v94
    %v324 = vunpack.c.l.b16 %v95
    %v325 = vunpack.c.l.b16 %v96
    %v326 = vunpack.c.l.b16 %v97
    %v327 = vunpack.c.l.b16 %v98
    %v328 = vunpack.c.l.b16 %v99
    %v329 = vunpack.c.l.b16 %v100
    %v330 = vunpack.c.l.b16 %v101
    %v331 = vunpack.c.l.b16 %v102
    %v332 = vunpack.c.l.b16 %v103
    %v333 = vunpack.c.l.b16 %v104
    %v334 = vunpack.c.l.b16 %v105
    %v335 = vunpack.c.l.b16 %v106
    %v336 = vunpack.c.l.b16 %v107
    %v337 = vunpack.c.l.b16 %v108
    %v338 = vunpack.c.l.b16 %v109
    %v339 = vunpack.c.l.b16 %v110
    %v340 = vunpack.c.l.b16 %v111
    %v341 = vunpack.c.l.b16 %v112
    %v342 = vunpack.c.l.b16 %v113
    %v343 = vunpack.c.l.b16 %v114
    %v344 = vunpack.c.l.b16 %v115
    %v345 = vunpack.c.l.b16 %v116
    %v346 = vunpack.c.l.b16 %v117
    %v347 = vunpack.c.l.b16 %v118
    %v348 = vunpack.c.l.b16 %v119
    %v349 = vunpack.c.l.b16 %v120
    %v350 = vunpack.c.l.b16 %v121
    %v351 = vunpack.c.l.b16 %v122
    %v352 = vunpack.c.l.b16 %v123
    %v353 = vunpack.c.l.b16 %v124
    %v354 = vunpack.c.l.b16 %v125
    %v355 = vunpack.c.l.b16 %v126
    %v356 = vunpack.c.l.b16 %v127
    %v357 = vunpack.c.l.b16 %v128
    %v358 = vunpack.c.l.b16 %v129
    %v359 = vunpack.c.l.b16 %v130
    %v360 = vunpack.c.l.b16 %v131
    %v361 = vunpack.c.l.b16 %v132
    %v362 = vunpack.c.l.b16 %v133
    %v363 = vunpack.c.l.b16 %v134
    %v364 = vunpack.c.l.b16 %v135
    %v365 = vunpack.c.l.b16 %v136
    %v366 = vunpack.c.l.b16 %v137
    %v367 = vunpack.c.l.b16 %v138
    %v368 = vunpack.c.l.b16 %v139
    %v369 = vunpack.c.l.b16 %v140
    %v370 = vunpack.c.l.b16 %v141
    %v371 = vpack.c.b16 %v276, %v275
    %v372 = vpack.c.b16 %v278, %v277
    %v373 = vpack.c.b16 %v280, %v279
    %v374 = vpack.c.b16 %v282, %v281
    %v375 = vpack.c.b16 %v284, %v283
    %v376 = vpack.c.b16 %v286, %v285
    %v377 = vpack.c.b16 %v288, %v287
    %v378 = vpack.c.b16 %v290, %v289
    %v379 = vpack.c.b16 %v292, %v291
    %v380 = vpack.c.b16 %v294, %v293
    %v381 = vpack.c.b16 %v296, %v295
    %v382 = vpack.c.b16 %v298, %v297
    %v383 = vpack.c.b16 %v300, %v299
    %v384 = vpack.c.b16 %v302, %v301
    %v385 = vpack.c.b16 %v304, %v303
    %v386 = vpack.c.b16 %v306, %v305
    %v387 = vpack.c.b16 %v308, %v307
    %v388 = vpack.c.b16 %v310, %v309
    %v389 = vpack.c.b16 %v312, %v311
    %v390 = vpack.c.b16 %v314, %v313
    %v391 = vpack.c.b16 %v316, %v315
    %v392 = vpack.c.b16 %v318, %v317
    %v393 = vpack.c.b16 %v320, %v319
    %v394 = vpack.c.b16 %v322, %v321
    %v395 = vpack.c.b16 %v324, %v323
    %v396 = vpack.c.b16 %v326, %v325
    %v397 = vpack.c.b16 %v328, %v327
    %v398 = vpack.c.b16 %v330, %v329
    %v399 = vpack.c.b16 %v332, %v331
    %v400 = vpack.c.b16 %v334, %v333
    %v401 = vpack.c.b16 %v336, %v335
    %v402 = vpack.c.b16 %v338, %v337
    %v403 = vpack.c.b16 %v340, %v339
    %v404 = vpack.c.b16 %v342, %v341
    %v405 = vpack.c.b16 %v344, %v343
    %v406 = vpack.c.b16 %v346, %v345
    %v407 = vpack.c.b16 %v348, %v347
    %v408 = vpack.c.b16 %v350, %v349
    %v409 = vpack.c.b16 %v352, %v351
    %v410 = vpack.c.b16 %v354, %v353
    %v411 = vpack.c.b16 %v356, %v355
    %v412 = vpack.c.b16 %v358, %v357
    %v413 = vpack.c.b16 %v360, %v359
    %v414 = vpack.c.b16 %v362, %v361
    %v415 = vpack.c.b16 %v364, %v363
    %v416 = vpack.c.b16 %v366, %v365
    %v417 = vpack.c.b16 %v368, %v367
    %v418 = vpack.c.b16 %v370, %v369
    %467 = vmatprep.subr.bf16.mxu0 0
    %468 = vmatpush1.bf16.msra.mxu0 %v371
    %469 = vmatprep.subr.bf16.mxu0 0
    %470 = vmatpush1.bf16.msra.mxu0 %v372
    %471 = vmatprep.subr.bf16.mxu0 0
    %472 = vmatpush1.bf16.msra.mxu0 %v373
    %473 = vmatprep.subr.bf16.mxu0 0
    %474 = vmatpush1.bf16.msra.mxu0 %v374
    %475 = vmatprep.subr.bf16.mxu0 0
    %476 = vmatpush1.bf16.msra.mxu0 %v375
    %477 = vmatprep.subr.bf16.mxu0 0
    %478 = vmatpush1.bf16.msra.mxu0 %v376
    %479 = vmatprep.subr.bf16.mxu0 0
    %480 = vmatpush1.bf16.msra.mxu0 %v377
    %481 = vmatprep.subr.bf16.mxu0 0
    %482 = vmatpush1.bf16.msra.mxu0 %v378
    %483 = vmatprep.subr.bf16.mxu0 0
    %484 = vmatpush1.bf16.msra.mxu0 %v379
    %485 = vmatprep.subr.bf16.mxu0 0
    %486 = vmatpush1.bf16.msra.mxu0 %v380
    %487 = vmatprep.subr.bf16.mxu0 0
    %488 = vmatpush1.bf16.msra.mxu0 %v381
    %489 = vmatprep.subr.bf16.mxu0 0
    %490 = vmatpush1.bf16.msra.mxu0 %v382
    %491 = vmatprep.subr.bf16.mxu0 0
    %492 = vmatpush1.bf16.msra.mxu0 %v383
    %493 = vmatprep.subr.bf16.mxu0 0
    %494 = vmatpush1.bf16.msra.mxu0 %v384
    %495 = vmatprep.subr.bf16.mxu0 0
    %496 = vmatpush1.bf16.msra.mxu0 %v385
    %497 = vmatprep.subr.bf16.mxu0 0
    %498 = vmatpush1.bf16.msra.mxu0 %v386
    %499 = vmatprep.mubr.bf16.mxu0 %v168
    %500 = vmatmul.mubr.bf16.gmra.mrb[0].mxu0 %v167
    %v501 = vpop.f32.mrb[0].mxu0
    %v502 = vadd.f32 %v147, %v501
    %v503 = vpop.f32.mrb[0].mxu0
    %v504 = vpop.f32.mrb[0].mxu0
    %v505 = vadd.f32 %v147, %v504
    %v506 = vpop.f32.mrb[0].mxu0
    %507 = vdwg.mxu0
    %508 = vmatprep.subr.bf16.mxu0 0
    %509 = vmatpush1.bf16.msra.mxu0 %v387
    %510 = vmatprep.subr.bf16.mxu0 0
    %511 = vmatpush1.bf16.msra.mxu0 %v388
    %512 = vmatprep.subr.bf16.mxu0 0
    %513 = vmatpush1.bf16.msra.mxu0 %v389
    %514 = vmatprep.subr.bf16.mxu0 0
    %515 = vmatpush1.bf16.msra.mxu0 %v390
    %516 = vmatprep.subr.bf16.mxu0 0
    %517 = vmatpush1.bf16.msra.mxu0 %v391
    %518 = vmatprep.subr.bf16.mxu0 0
    %519 = vmatpush1.bf16.msra.mxu0 %v392
    %520 = vmatprep.subr.bf16.mxu0 0
    %521 = vmatpush1.bf16.msra.mxu0 %v393
    %522 = vmatprep.subr.bf16.mxu0 0
    %523 = vmatpush1.bf16.msra.mxu0 %v394
    %524 = vmatprep.subr.bf16.mxu0 0
    %525 = vmatpush1.bf16.msra.mxu0 %v395
    %526 = vmatprep.subr.bf16.mxu0 0
    %527 = vmatpush1.bf16.msra.mxu0 %v396
    %528 = vmatprep.subr.bf16.mxu0 0
    %529 = vmatpush1.bf16.msra.mxu0 %v397
    %530 = vmatprep.subr.bf16.mxu0 0
    %531 = vmatpush1.bf16.msra.mxu0 %v398
    %532 = vmatprep.subr.bf16.mxu0 0
    %533 = vmatpush1.bf16.msra.mxu0 %v399
    %534 = vmatprep.subr.bf16.mxu0 0
    %535 = vmatpush1.bf16.msra.mxu0 %v400
    %536 = vmatprep.subr.bf16.mxu0 0
    %537 = vmatpush1.bf16.msra.mxu0 %v401
    %538 = vmatprep.subr.bf16.mxu0 0
    %539 = vmatpush1.bf16.msra.mxu0 %v402
    %540 = vmatprep.mubr.bf16.mxu0 %v170
    %541 = vmatmul.mubr.bf16.gmra.mrb[0].mxu0 %v169
    %v542 = vpop.f32.mrb[0].mxu0
    %v543 = vadd.f32 %v502, %v542
    %v544 = vpop.f32.mrb[0].mxu0
    %v545 = vpop.f32.mrb[0].mxu0
    %v546 = vadd.f32 %v505, %v545
    %v547 = vpop.f32.mrb[0].mxu0
    %548 = vdwg.mxu0
    %549 = vmatprep.subr.bf16.mxu0 0
    %550 = vmatpush1.bf16.msra.mxu0 %v403
    %551 = vmatprep.subr.bf16.mxu0 0
    %552 = vmatpush1.bf16.msra.mxu0 %v404
    %553 = vmatprep.subr.bf16.mxu0 0
    %554 = vmatpush1.bf16.msra.mxu0 %v405
    %555 = vmatprep.subr.bf16.mxu0 0
    %556 = vmatpush1.bf16.msra.mxu0 %v406
    %557 = vmatprep.subr.bf16.mxu0 0
    %558 = vmatpush1.bf16.msra.mxu0 %v407
    %559 = vmatprep.subr.bf16.mxu0 0
    %560 = vmatpush1.bf16.msra.mxu0 %v408
    %561 = vmatprep.subr.bf16.mxu0 0
    %562 = vmatpush1.bf16.msra.mxu0 %v409
    %563 = vmatprep.subr.bf16.mxu0 0
    %564 = vmatpush1.bf16.msra.mxu0 %v410
    %565 = vmatprep.subr.bf16.mxu0 0
    %566 = vmatpush1.bf16.msra.mxu0 %v411
    %567 = vmatprep.subr.bf16.mxu0 0
    %568 = vmatpush1.bf16.msra.mxu0 %v412
    %569 = vmatprep.subr.bf16.mxu0 0
    %570 = vmatpush1.bf16.msra.mxu0 %v413
    %571 = vmatprep.subr.bf16.mxu0 0
    %572 = vmatpush1.bf16.msra.mxu0 %v414
    %573 = vmatprep.subr.bf16.mxu0 0
    %574 = vmatpush1.bf16.msra.mxu0 %v415
    %575 = vmatprep.subr.bf16.mxu0 0
    %576 = vmatpush1.bf16.msra.mxu0 %v416
    %577 = vmatprep.subr.bf16.mxu0 0
    %578 = vmatpush1.bf16.msra.mxu0 %v417
    %579 = vmatprep.subr.bf16.mxu0 0
    %580 = vmatpush1.bf16.msra.mxu0 %v418
    %581 = vmatprep.mubr.bf16.mxu0 %v172
    %582 = vmatmul.mubr.bf16.gmra.mrb[0].mxu0 %v171
    %v583 = vpop.f32.mrb[0].mxu0
    %v584 = vadd.f32 %v543, %v583
    %v585 = vpop.f32.mrb[0].mxu0
    %v586 = vpop.f32.mrb[0].mxu0
    %v587 = vadd.f32 %v546, %v586
    %v588 = vpop.f32.mrb[0].mxu0
    %589 = vdwg.mxu0
    %v590 = vld [vmem:[%s0] sm:$0xf]
    %v591 = vld [vmem:[%s4] sm:$0xff]
    %v592 = vld [vmem:[%s4 + $0x8] sm:$0xff]
    %v593 = vld [vmem:[%s4 + $0x10] sm:$0xff]
    %v594 = vld [vmem:[%s4 + $0x18] sm:$0xff]
    %v595 = vld [vmem:[%s4 + $0x20] sm:$0xff]
    %v596 = vld [vmem:[%s4 + $0x28] sm:$0xff]
    %v597 = vld [vmem:[%s4 + $0x30] sm:$0xff]
    %v598 = vld [vmem:[%s4 + $0x38] sm:$0xff]
    %v599 = vld [vmem:[%s5] sm:$0x3]
    %v601 = vlaneseq
    %v602 = vshrl.u32 %v601, 7
    %v603 = vsub.s32 0, %v602
    %v604 = vrot.slane %v599, %v603
    %v605 = vlaneseq
    %v606 = vshrl.u32 %v605, 7
    %v607 = vsub.s32 1, %v606
    %v608 = vrot.slane %v599, %v607
    %v619 = vunpack.c.l.b16 %v591
    %v620 = vunpack.c.h.b16 %v591
    %v621 = vunpack.c.l.b16 %v592
    %v622 = vunpack.c.h.b16 %v592
    %v623 = vunpack.c.l.b16 %v593
    %v624 = vunpack.c.h.b16 %v593
    %v625 = vunpack.c.l.b16 %v594
    %v626 = vunpack.c.h.b16 %v594
    %v627 = vunpack.c.l.b16 %v595
    %v628 = vunpack.c.h.b16 %v595
    %v629 = vunpack.c.l.b16 %v596
    %v630 = vunpack.c.h.b16 %v596
    %v631 = vunpack.c.l.b16 %v597
    %v632 = vunpack.c.h.b16 %v597
    %v633 = vunpack.c.l.b16 %v598
    %v634 = vunpack.c.h.b16 %v598
    %v635 = vpack.c.b16 %v621, %v619
    %v636 = vpack.c.b16 %v622, %v620
    %v637 = vpack.c.b16 %v625, %v623
    %v638 = vpack.c.b16 %v626, %v624
    %v639 = vpack.c.b16 %v629, %v627
    %v640 = vpack.c.b16 %v630, %v628
    %v641 = vpack.c.b16 %v633, %v631
    %v642 = vpack.c.b16 %v634, %v632
    %vm651 = vcmask 523264
    %v653 = vsel %vm651, %v590, 0
    %655 = vmatprep.subr.bf16.mxu0 %v636
    %656 = vmatpush1.bf16.msra.mxu0 %v635
    %657 = vmatprep.subr.bf16.mxu0 %v638
    %658 = vmatpush1.bf16.msra.mxu0 %v637
    %659 = vmatprep.subr.bf16.mxu0 %v640
    %660 = vmatpush1.bf16.msra.mxu0 %v639
    %661 = vmatprep.subr.bf16.mxu0 %v642
    %662 = vmatpush1.bf16.msra.mxu0 %v641
    %663 = vmatprep.subr.bf16.mxu0 0
    %664 = vmatpush1.bf16.msra.mxu0 0
    %665 = vmatprep.subr.bf16.mxu0 0
    %666 = vmatpush1.bf16.msra.mxu0 0
    %667 = vmatprep.subr.bf16.mxu0 0
    %668 = vmatpush1.bf16.msra.mxu0 0
    %669 = vmatprep.subr.bf16.mxu0 0
    %670 = vmatpush1.bf16.msra.mxu0 0
    %671 = vmatprep.subr.bf16.mxu0 0
    %672 = vmatpush1.bf16.msra.mxu0 0
    %673 = vmatprep.subr.bf16.mxu0 0
    %674 = vmatpush1.bf16.msra.mxu0 0
    %675 = vmatprep.subr.bf16.mxu0 0
    %676 = vmatpush1.bf16.msra.mxu0 0
    %677 = vmatprep.subr.bf16.mxu0 0
    %678 = vmatpush1.bf16.msra.mxu0 0
    %679 = vmatprep.subr.bf16.mxu0 0
    %680 = vmatpush1.bf16.msra.mxu0 0
    %681 = vmatprep.subr.bf16.mxu0 0
    %682 = vmatpush1.bf16.msra.mxu0 0
    %683 = vmatprep.subr.bf16.mxu0 0
    %684 = vmatpush1.bf16.msra.mxu0 0
    %685 = vmatprep.subr.bf16.mxu0 0
    %686 = vmatpush1.bf16.msra.mxu0 0
    %687 = vmatprep.mubr.bf16.mxu0 0
    %688 = vmatmul.mubr.bf16.gmra.mrb[0].mxu0 %v653
    %v689 = vpop.f32.mrb[0].mxu0
    %v690 = vadd.f32 %v604, %v689
    %v691 = vpop.f32.mrb[0].mxu0
    %v692 = vadd.f32 %v608, %v691
    %v693 = vpop.f32.mrb[0].mxu0
    %v694 = vpop.f32.mrb[0].mxu0
    %695 = vdwg.mxu0
    %v696 = vtanh.pop %v690
    %v697 = vtanh.pop %v692
    %v698 = vld [vmem:[%s6] sm:$0xf]
    %v699 = vld [vmem:[%s6 + $0x4] sm:$0xf]
    %v700 = vld [vmem:[%s6 + $0x8] sm:$0xf]
    %v701 = vld [vmem:[%s6 + $0xc] sm:$0xf]
    %v702 = vld [vmem:[%s6 + $0x10] sm:$0xf]
    %v703 = vld [vmem:[%s6 + $0x14] sm:$0xf]
    %v704 = vld [vmem:[%s6 + $0x18] sm:$0xf]
    %v705 = vld [vmem:[%s6 + $0x1c] sm:$0xf]
    %v706 = vld [vmem:[%s6 + $0x20] sm:$0xf]
    %v707 = vld [vmem:[%s6 + $0x24] sm:$0xf]
    %v708 = vld [vmem:[%s6 + $0x28] sm:$0xf]
    %v709 = vld [vmem:[%s6 + $0x2c] sm:$0xf]
    %v710 = vld [vmem:[%s6 + $0x30] sm:$0xf]
    %v711 = vld [vmem:[%s6 + $0x34] sm:$0xf]
    %v712 = vld [vmem:[%s6 + $0x38] sm:$0xf]
    %v713 = vld [vmem:[%s6 + $0x3c] sm:$0xf]
    %v714 = vld [vmem:[%s6 + $0x40] sm:$0xf]
    %v715 = vld [vmem:[%s6 + $0x44] sm:$0xf]
    %v716 = vld [vmem:[%s6 + $0x48] sm:$0xf]
    %v717 = vld [vmem:[%s6 + $0x4c] sm:$0xf]
    %v718 = vld [vmem:[%s6 + $0x50] sm:$0xf]
    %v719 = vld [vmem:[%s6 + $0x54] sm:$0xf]
    %v720 = vld [vmem:[%s6 + $0x58] sm:$0xf]
    %v721 = vld [vmem:[%s6 + $0x5c] sm:$0xf]
    %v722 = vld [vmem:[%s6 + $0x60] sm:$0xf]
    %v723 = vld [vmem:[%s6 + $0x64] sm:$0xf]
    %v724 = vld [vmem:[%s6 + $0x68] sm:$0xf]
    %v725 = vld [vmem:[%s6 + $0x6c] sm:$0xf]
    %v726 = vld [vmem:[%s6 + $0x70] sm:$0xf]
    %v727 = vld [vmem:[%s6 + $0x74] sm:$0xf]
    %v728 = vld [vmem:[%s6 + $0x78] sm:$0xf]
    %v729 = vld [vmem:[%s6 + $0x7c] sm:$0xf]
    %v730 = vpack.c.bf16 %v587, %v584
    %v731 = vld [vmem:[%s7] sm:$0xff]
    %v732 = vld [vmem:[%s7 + $0x8] sm:$0xff]
    %v733 = vld [vmem:[%s7 + $0x10] sm:$0xff]
    %v734 = vld [vmem:[%s7 + $0x18] sm:$0xff]
    %v735 = vld [vmem:[%s7 + $0x20] sm:$0xff]
    %v736 = vld [vmem:[%s7 + $0x28] sm:$0xff]
    %v737 = vld [vmem:[%s7 + $0x30] sm:$0xff]
    %v738 = vld [vmem:[%s7 + $0x38] sm:$0xff]
    %v739 = vld [vmem:[%s7 + $0x40] sm:$0xff]
    %v740 = vld [vmem:[%s7 + $0x48] sm:$0xff]
    %v741 = vld [vmem:[%s7 + $0x50] sm:$0xff]
    %v742 = vld [vmem:[%s7 + $0x58] sm:$0xff]
    %v743 = vld [vmem:[%s7 + $0x60] sm:$0xff]
    %v744 = vld [vmem:[%s7 + $0x68] sm:$0xff]
    %v745 = vld [vmem:[%s7 + $0x70] sm:$0xff]
    %v746 = vld [vmem:[%s7 + $0x78] sm:$0xff]
    %v747 = vld [vmem:[%s7 + $0x80] sm:$0xff]
    %v748 = vld [vmem:[%s7 + $0x88] sm:$0xff]
    %v749 = vld [vmem:[%s7 + $0x90] sm:$0xff]
    %v750 = vld [vmem:[%s7 + $0x98] sm:$0xff]
    %v751 = vld [vmem:[%s7 + $0xa0] sm:$0xff]
    %v752 = vld [vmem:[%s7 + $0xa8] sm:$0xff]
    %v753 = vld [vmem:[%s7 + $0xb0] sm:$0xff]
    %v754 = vld [vmem:[%s7 + $0xb8] sm:$0xff]
    %v755 = vld [vmem:[%s7 + $0xc0] sm:$0xff]
    %v756 = vld [vmem:[%s7 + $0xc8] sm:$0xff]
    %v757 = vld [vmem:[%s7 + $0xd0] sm:$0xff]
    %v758 = vld [vmem:[%s7 + $0xd8] sm:$0xff]
    %v759 = vld [vmem:[%s7 + $0xe0] sm:$0xff]
    %v760 = vld [vmem:[%s7 + $0xe8] sm:$0xff]
    %v761 = vld [vmem:[%s7 + $0xf0] sm:$0xff]
    %v762 = vld [vmem:[%s7 + $0xf8] sm:$0xff]
    %764 = vset.pattern.permute.xlu0 0
    %765 = vperm.xlu0 %764, %v731
    %v766 = vpop.permute.xlu0 %765
    %769 = vset.pattern.permute.xlu0 0
    %770 = vperm.xlu0 %769, %v732
    %v771 = vpop.permute.xlu0 %770
    %774 = vset.pattern.permute.xlu0 0
    %775 = vperm.xlu0 %774, %v733
    %v776 = vpop.permute.xlu0 %775
    %779 = vset.pattern.permute.xlu0 0
    %780 = vperm.xlu0 %779, %v734
    %v781 = vpop.permute.xlu0 %780
    %784 = vset.pattern.permute.xlu0 0
    %785 = vperm.xlu0 %784, %v735
    %v786 = vpop.permute.xlu0 %785
    %789 = vset.pattern.permute.xlu0 0
    %790 = vperm.xlu0 %789, %v736
    %v791 = vpop.permute.xlu0 %790
    %794 = vset.pattern.permute.xlu0 0
    %795 = vperm.xlu0 %794, %v737
    %v796 = vpop.permute.xlu0 %795
    %799 = vset.pattern.permute.xlu0 0
    %800 = vperm.xlu0 %799, %v738
    %v801 = vpop.permute.xlu0 %800
    %804 = vset.pattern.permute.xlu0 0
    %805 = vperm.xlu0 %804, %v739
    %v806 = vpop.permute.xlu0 %805
    %809 = vset.pattern.permute.xlu0 0
    %810 = vperm.xlu0 %809, %v740
    %v811 = vpop.permute.xlu0 %810
    %814 = vset.pattern.permute.xlu0 0
    %815 = vperm.xlu0 %814, %v741
    %v816 = vpop.permute.xlu0 %815
    %819 = vset.pattern.permute.xlu0 0
    %820 = vperm.xlu0 %819, %v742
    %v821 = vpop.permute.xlu0 %820
    %824 = vset.pattern.permute.xlu0 0
    %825 = vperm.xlu0 %824, %v743
    %v826 = vpop.permute.xlu0 %825
    %829 = vset.pattern.permute.xlu0 0
    %830 = vperm.xlu0 %829, %v744
    %v831 = vpop.permute.xlu0 %830
    %834 = vset.pattern.permute.xlu0 0
    %835 = vperm.xlu0 %834, %v745
    %v836 = vpop.permute.xlu0 %835
    %839 = vset.pattern.permute.xlu0 0
    %840 = vperm.xlu0 %839, %v746
    %v841 = vpop.permute.xlu0 %840
    %844 = vset.pattern.permute.xlu0 0
    %845 = vperm.xlu0 %844, %v747
    %v846 = vpop.permute.xlu0 %845
    %849 = vset.pattern.permute.xlu0 0
    %850 = vperm.xlu0 %849, %v748
    %v851 = vpop.permute.xlu0 %850
    %854 = vset.pattern.permute.xlu0 0
    %855 = vperm.xlu0 %854, %v749
    %v856 = vpop.permute.xlu0 %855
    %859 = vset.pattern.permute.xlu0 0
    %860 = vperm.xlu0 %859, %v750
    %v861 = vpop.permute.xlu0 %860
    %864 = vset.pattern.permute.xlu0 0
    %865 = vperm.xlu0 %864, %v751
    %v866 = vpop.permute.xlu0 %865
    %869 = vset.pattern.permute.xlu0 0
    %870 = vperm.xlu0 %869, %v752
    %v871 = vpop.permute.xlu0 %870
    %874 = vset.pattern.permute.xlu0 0
    %875 = vperm.xlu0 %874, %v753
    %v876 = vpop.permute.xlu0 %875
    %879 = vset.pattern.permute.xlu0 0
    %880 = vperm.xlu0 %879, %v754
    %v881 = vpop.permute.xlu0 %880
    %884 = vset.pattern.permute.xlu0 0
    %885 = vperm.xlu0 %884, %v755
    %v886 = vpop.permute.xlu0 %885
    %889 = vset.pattern.permute.xlu0 0
    %890 = vperm.xlu0 %889, %v756
    %v891 = vpop.permute.xlu0 %890
    %894 = vset.pattern.permute.xlu0 0
    %895 = vperm.xlu0 %894, %v757
    %v896 = vpop.permute.xlu0 %895
    %899 = vset.pattern.permute.xlu0 0
    %900 = vperm.xlu0 %899, %v758
    %v901 = vpop.permute.xlu0 %900
    %904 = vset.pattern.permute.xlu0 0
    %905 = vperm.xlu0 %904, %v759
    %v906 = vpop.permute.xlu0 %905
    %909 = vset.pattern.permute.xlu0 0
    %910 = vperm.xlu0 %909, %v760
    %v911 = vpop.permute.xlu0 %910
    %914 = vset.pattern.permute.xlu0 0
    %915 = vperm.xlu0 %914, %v761
    %v916 = vpop.permute.xlu0 %915
    %919 = vset.pattern.permute.xlu0 0
    %920 = vperm.xlu0 %919, %v762
    %v921 = vpop.permute.xlu0 %920
    %v955 = vunpack.c.l.b16 %v698
    %v956 = vunpack.c.l.b16 %v699
    %v957 = vunpack.c.l.b16 %v700
    %v958 = vunpack.c.l.b16 %v701
    %v959 = vunpack.c.l.b16 %v702
    %v960 = vunpack.c.l.b16 %v703
    %v961 = vunpack.c.l.b16 %v704
    %v962 = vunpack.c.l.b16 %v705
    %v963 = vunpack.c.l.b16 %v706
    %v964 = vunpack.c.l.b16 %v707
    %v965 = vunpack.c.l.b16 %v708
    %v966 = vunpack.c.l.b16 %v709
    %v967 = vunpack.c.l.b16 %v710
    %v968 = vunpack.c.l.b16 %v711
    %v969 = vunpack.c.l.b16 %v712
    %v970 = vunpack.c.l.b16 %v713
    %v971 = vunpack.c.l.b16 %v714
    %v972 = vunpack.c.l.b16 %v715
    %v973 = vunpack.c.l.b16 %v716
    %v974 = vunpack.c.l.b16 %v717
    %v975 = vunpack.c.l.b16 %v718
    %v976 = vunpack.c.l.b16 %v719
    %v977 = vunpack.c.l.b16 %v720
    %v978 = vunpack.c.l.b16 %v721
    %v979 = vunpack.c.l.b16 %v722
    %v980 = vunpack.c.l.b16 %v723
    %v981 = vunpack.c.l.b16 %v724
    %v982 = vunpack.c.l.b16 %v725
    %v983 = vunpack.c.l.b16 %v726
    %v984 = vunpack.c.l.b16 %v727
    %v985 = vunpack.c.l.b16 %v728
    %v986 = vunpack.c.l.b16 %v729
    %v987 = vpack.c.b16 %v956, %v955
    %v988 = vpack.c.b16 %v958, %v957
    %v989 = vpack.c.b16 %v960, %v959
    %v990 = vpack.c.b16 %v962, %v961
    %v991 = vpack.c.b16 %v964, %v963
    %v992 = vpack.c.b16 %v966, %v965
    %v993 = vpack.c.b16 %v968, %v967
    %v994 = vpack.c.b16 %v970, %v969
    %v995 = vpack.c.b16 %v972, %v971
    %v996 = vpack.c.b16 %v974, %v973
    %v997 = vpack.c.b16 %v976, %v975
    %v998 = vpack.c.b16 %v978, %v977
    %v999 = vpack.c.b16 %v980, %v979
    %v1000 = vpack.c.b16 %v982, %v981
    %v1001 = vpack.c.b16 %v984, %v983
    %v1002 = vpack.c.b16 %v986, %v985
    %vm1003 = vcmask 261120
    %v1005 = vsel %vm1003, %v987, 0
    %v1008 = vsel %vm1003, %v988, 0
    %v1011 = vsel %vm1003, %v989, 0
    %v1014 = vsel %vm1003, %v990, 0
    %v1017 = vsel %vm1003, %v991, 0
    %v1020 = vsel %vm1003, %v992, 0
    %v1023 = vsel %vm1003, %v993, 0
    %v1026 = vsel %vm1003, %v994, 0
    %v1029 = vsel %vm1003, %v995, 0
    %v1032 = vsel %vm1003, %v996, 0
    %v1035 = vsel %vm1003, %v997, 0
    %v1038 = vsel %vm1003, %v998, 0
    %v1041 = vsel %vm1003, %v999, 0
    %v1044 = vsel %vm1003, %v1000, 0
    %v1047 = vsel %vm1003, %v1001, 0
    %v1050 = vsel %vm1003, %v1002, 0
    %v1053 = vsel %vm1003, %v730, 0
    %1055 = vmatprep.subr.bf16.mxu0 0
    %1056 = vmatpush1.bf16.xpose.msra.mxu0 %v1053
    %1057 = vmatprep.subr.bf16.mxu0 0
    %1058 = vmatpush1.bf16.xpose.msra.mxu0 0
    %1059 = vmatprep.subr.bf16.mxu0 0
    %1060 = vmatpush1.bf16.xpose.msra.mxu0 0
    %1061 = vmatprep.subr.bf16.mxu0 0
    %1062 = vmatpush1.bf16.xpose.msra.mxu0 0
    %1063 = vmatprep.subr.bf16.mxu0 0
    %1064 = vmatpush1.bf16.xpose.msra.mxu0 0
    %1065 = vmatprep.subr.bf16.mxu0 0
    %1066 = vmatpush1.bf16.xpose.msra.mxu0 0
    %1067 = vmatprep.subr.bf16.mxu0 0
    %1068 = vmatpush1.bf16.xpose.msra.mxu0 0
    %1069 = vmatprep.subr.bf16.mxu0 0
    %1070 = vmatpush1.bf16.xpose.msra.mxu0 0
    %1071 = vmatprep.subr.bf16.mxu0 0
    %1072 = vmatpush1.bf16.xpose.msra.mxu0 0
    %1073 = vmatprep.subr.bf16.mxu0 0
    %1074 = vmatpush1.bf16.xpose.msra.mxu0 0
    %1075 = vmatprep.subr.bf16.mxu0 0
    %1076 = vmatpush1.bf16.xpose.msra.mxu0 0
    %1077 = vmatprep.subr.bf16.mxu0 0
    %1078 = vmatpush1.bf16.xpose.msra.mxu0 0
    %1079 = vmatprep.subr.bf16.mxu0 0
    %1080 = vmatpush1.bf16.xpose.msra.mxu0 0
    %1081 = vmatprep.subr.bf16.mxu0 0
    %1082 = vmatpush1.bf16.xpose.msra.mxu0 0
    %1083 = vmatprep.subr.bf16.mxu0 0
    %1084 = vmatpush1.bf16.xpose.msra.mxu0 0
    %1085 = vmatprep.subr.bf16.mxu0 0
    %1086 = vmatpush1.bf16.xpose.msra.mxu0 0
    %1087 = vmatprep.mubr.bf16.mxu0 0
    %1088 = vmatmul.mubr.bf16.gmra.mrb[0].mxu0 %v1005
    %v1089 = vpop.f32.mrb[0].mxu0
    %v1090 = vadd.f32 %v766, %v1089
    %v1091 = vpop.f32.mrb[0].mxu0
    %v1092 = vpop.f32.mrb[0].mxu0
    %v1093 = vadd.f32 %v771, %v1092
    %v1094 = vpop.f32.mrb[0].mxu0
    %1095 = vmatprep.mubr.bf16.mxu0 0
    %1096 = vmatmul.mubr.bf16.gmra.mrb[0].mxu0 %v1008
    %v1097 = vpop.f32.mrb[0].mxu0
    %v1098 = vadd.f32 %v776, %v1097
    %v1099 = vpop.f32.mrb[0].mxu0
    %v1100 = vpop.f32.mrb[0].mxu0
    %v1101 = vadd.f32 %v781, %v1100
    %v1102 = vpop.f32.mrb[0].mxu0
    %1103 = vmatprep.mubr.bf16.mxu0 0
    %1104 = vmatmul.mubr.bf16.gmra.mrb[0].mxu0 %v1011
    %v1105 = vpop.f32.mrb[0].mxu0
    %v1106 = vadd.f32 %v786, %v1105
    %v1107 = vpop.f32.mrb[0].mxu0
    %v1108 = vpop.f32.mrb[0].mxu0
    %v1109 = vadd.f32 %v791, %v1108
    %v1110 = vpop.f32.mrb[0].mxu0
    %1111 = vmatprep.mubr.bf16.mxu0 0
    %1112 = vmatmul.mubr.bf16.gmra.mrb[0].mxu0 %v1014
    %v1113 = vpop.f32.mrb[0].mxu0
    %v1114 = vadd.f32 %v796, %v1113
    %v1115 = vpop.f32.mrb[0].mxu0
    %v1116 = vpop.f32.mrb[0].mxu0
    %v1117 = vadd.f32 %v801, %v1116
    %v1118 = vpop.f32.mrb[0].mxu0
    %1119 = vmatprep.mubr.bf16.mxu0 0
    %1120 = vmatmul.mubr.bf16.gmra.mrb[0].mxu0 %v1017
    %v1121 = vpop.f32.mrb[0].mxu0
    %v1122 = vadd.f32 %v806, %v1121
    %v1123 = vpop.f32.mrb[0].mxu0
    %v1124 = vpop.f32.mrb[0].mxu0
    %v1125 = vadd.f32 %v811, %v1124
    %v1126 = vpop.f32.mrb[0].mxu0
    %1127 = vmatprep.mubr.bf16.mxu0 0
    %1128 = vmatmul.mubr.bf16.gmra.mrb[0].mxu0 %v1020
    %v1129 = vpop.f32.mrb[0].mxu0
    %v1130 = vadd.f32 %v816, %v1129
    %v1131 = vpop.f32.mrb[0].mxu0
    %v1132 = vpop.f32.mrb[0].mxu0
    %v1133 = vadd.f32 %v821, %v1132
    %v1134 = vpop.f32.mrb[0].mxu0
    %1135 = vmatprep.mubr.bf16.mxu0 0
    %1136 = vmatmul.mubr.bf16.gmra.mrb[0].mxu0 %v1023
    %v1137 = vpop.f32.mrb[0].mxu0
    %v1138 = vadd.f32 %v826, %v1137
    %v1139 = vpop.f32.mrb[0].mxu0
    %v1140 = vpop.f32.mrb[0].mxu0
    %v1141 = vadd.f32 %v831, %v1140
    %v1142 = vpop.f32.mrb[0].mxu0
    %1143 = vmatprep.mubr.bf16.mxu0 0
    %1144 = vmatmul.mubr.bf16.gmra.mrb[0].mxu0 %v1026
    %v1145 = vpop.f32.mrb[0].mxu0
    %v1146 = vadd.f32 %v836, %v1145
    %v1147 = vpop.f32.mrb[0].mxu0
    %v1148 = vpop.f32.mrb[0].mxu0
    %v1149 = vadd.f32 %v841, %v1148
    %v1150 = vpop.f32.mrb[0].mxu0
    %1151 = vmatprep.mubr.bf16.mxu0 0
    %1152 = vmatmul.mubr.bf16.gmra.mrb[0].mxu0 %v1029
    %v1153 = vpop.f32.mrb[0].mxu0
    %v1154 = vadd.f32 %v846, %v1153
    %v1155 = vpop.f32.mrb[0].mxu0
    %v1156 = vpop.f32.mrb[0].mxu0
    %v1157 = vadd.f32 %v851, %v1156
    %v1158 = vpop.f32.mrb[0].mxu0
    %1159 = vmatprep.mubr.bf16.mxu0 0
    %1160 = vmatmul.mubr.bf16.gmra.mrb[0].mxu0 %v1032
    %v1161 = vpop.f32.mrb[0].mxu0
    %v1162 = vadd.f32 %v856, %v1161
    %v1163 = vpop.f32.mrb[0].mxu0
    %v1164 = vpop.f32.mrb[0].mxu0
    %v1165 = vadd.f32 %v861, %v1164
    %v1166 = vpop.f32.mrb[0].mxu0
    %1167 = vmatprep.mubr.bf16.mxu0 0
    %1168 = vmatmul.mubr.bf16.gmra.mrb[0].mxu0 %v1035
    %v1169 = vpop.f32.mrb[0].mxu0
    %v1170 = vadd.f32 %v866, %v1169
    %v1171 = vpop.f32.mrb[0].mxu0
    %v1172 = vpop.f32.mrb[0].mxu0
    %v1173 = vadd.f32 %v871, %v1172
    %v1174 = vpop.f32.mrb[0].mxu0
    %1175 = vmatprep.mubr.bf16.mxu0 0
    %1176 = vmatmul.mubr.bf16.gmra.mrb[0].mxu0 %v1038
    %v1177 = vpop.f32.mrb[0].mxu0
    %v1178 = vadd.f32 %v876, %v1177
    %v1179 = vpop.f32.mrb[0].mxu0
    %v1180 = vpop.f32.mrb[0].mxu0
    %v1181 = vadd.f32 %v881, %v1180
    %v1182 = vpop.f32.mrb[0].mxu0
    %1183 = vmatprep.mubr.bf16.mxu0 0
    %1184 = vmatmul.mubr.bf16.gmra.mrb[0].mxu0 %v1041
    %v1185 = vpop.f32.mrb[0].mxu0
    %v1186 = vadd.f32 %v886, %v1185
    %v1187 = vpop.f32.mrb[0].mxu0
    %v1188 = vpop.f32.mrb[0].mxu0
    %v1189 = vadd.f32 %v891, %v1188
    %v1190 = vpop.f32.mrb[0].mxu0
    %1191 = vmatprep.mubr.bf16.mxu0 0
    %1192 = vmatmul.mubr.bf16.gmra.mrb[0].mxu0 %v1044
    %v1193 = vpop.f32.mrb[0].mxu0
    %v1194 = vadd.f32 %v896, %v1193
    %v1195 = vpop.f32.mrb[0].mxu0
    %v1196 = vpop.f32.mrb[0].mxu0
    %v1197 = vadd.f32 %v901, %v1196
    %v1198 = vpop.f32.mrb[0].mxu0
    %1199 = vmatprep.mubr.bf16.mxu0 0
    %1200 = vmatmul.mubr.bf16.gmra.mrb[0].mxu0 %v1047
    %v1201 = vpop.f32.mrb[0].mxu0
    %v1202 = vadd.f32 %v906, %v1201
    %v1203 = vpop.f32.mrb[0].mxu0
    %v1204 = vpop.f32.mrb[0].mxu0
    %v1205 = vadd.f32 %v911, %v1204
    %v1206 = vpop.f32.mrb[0].mxu0
    %1207 = vmatprep.mubr.bf16.mxu0 0
    %1208 = vmatmul.mubr.bf16.gmra.mrb[0].mxu0 %v1050
    %v1209 = vpop.f32.mrb[0].mxu0
    %v1210 = vadd.f32 %v916, %v1209
    %v1211 = vpop.f32.mrb[0].mxu0
    %v1212 = vpop.f32.mrb[0].mxu0
    %v1213 = vadd.f32 %v921, %v1212
    %v1214 = vpop.f32.mrb[0].mxu0
    %1215 = vdwg.mxu0
    %v1216 = vtanh.pop %v1090
    %v1217 = vtanh.pop %v1093
    %v1218 = vtanh.pop %v1098
    %v1219 = vtanh.pop %v1101
    %v1220 = vtanh.pop %v1106
    %v1221 = vtanh.pop %v1109
    %v1222 = vtanh.pop %v1114
    %v1223 = vtanh.pop %v1117
    %v1224 = vtanh.pop %v1122
    %v1225 = vtanh.pop %v1125
    %v1226 = vtanh.pop %v1130
    %v1227 = vtanh.pop %v1133
    %v1228 = vtanh.pop %v1138
    %v1229 = vtanh.pop %v1141
    %v1230 = vtanh.pop %v1146
    %v1231 = vtanh.pop %v1149
    %v1232 = vtanh.pop %v1154
    %v1233 = vtanh.pop %v1157
    %v1234 = vtanh.pop %v1162
    %v1235 = vtanh.pop %v1165
    %v1236 = vtanh.pop %v1170
    %v1237 = vtanh.pop %v1173
    %v1238 = vtanh.pop %v1178
    %v1239 = vtanh.pop %v1181
    %v1240 = vtanh.pop %v1186
    %v1241 = vtanh.pop %v1189
    %v1242 = vtanh.pop %v1194
    %v1243 = vtanh.pop %v1197
    %v1244 = vtanh.pop %v1202
    %v1245 = vtanh.pop %v1205
    %v1246 = vtanh.pop %v1210
    %v1247 = vtanh.pop %v1213
    %v1248 = vld [vmem:[%s8] sm:$0xff]
    %v1249 = vld [vmem:[%s8 + $0x8] sm:$0xff]
    %v1250 = vld [vmem:[%s8 + $0x10] sm:$0xff]
    %v1251 = vld [vmem:[%s8 + $0x18] sm:$0xff]
    %v1252 = vld [vmem:[%s8 + $0x20] sm:$0xff]
    %v1253 = vld [vmem:[%s8 + $0x28] sm:$0xff]
    %v1254 = vld [vmem:[%s8 + $0x30] sm:$0xff]
    %v1255 = vld [vmem:[%s8 + $0x38] sm:$0xff]
    %v1256 = vld [vmem:[%s8 + $0x40] sm:$0xff]
    %v1257 = vld [vmem:[%s8 + $0x48] sm:$0xff]
    %v1258 = vld [vmem:[%s8 + $0x50] sm:$0xff]
    %v1259 = vld [vmem:[%s8 + $0x58] sm:$0xff]
    %v1260 = vld [vmem:[%s8 + $0x60] sm:$0xff]
    %v1261 = vld [vmem:[%s8 + $0x68] sm:$0xff]
    %v1262 = vld [vmem:[%s8 + $0x70] sm:$0xff]
    %v1263 = vld [vmem:[%s8 + $0x78] sm:$0xff]
    %v1264 = vld [vmem:[%s8 + $0x80] sm:$0xff]
    %v1265 = vld [vmem:[%s8 + $0x88] sm:$0xff]
    %v1266 = vld [vmem:[%s8 + $0x90] sm:$0xff]
    %v1267 = vld [vmem:[%s8 + $0x98] sm:$0xff]
    %v1268 = vld [vmem:[%s8 + $0xa0] sm:$0xff]
    %v1269 = vld [vmem:[%s8 + $0xa8] sm:$0xff]
    %v1270 = vld [vmem:[%s8 + $0xb0] sm:$0xff]
    %v1271 = vld [vmem:[%s8 + $0xb8] sm:$0xff]
    %v1272 = vld [vmem:[%s8 + $0xc0] sm:$0xff]
    %v1273 = vld [vmem:[%s8 + $0xc8] sm:$0xff]
    %v1274 = vld [vmem:[%s8 + $0xd0] sm:$0xff]
    %v1275 = vld [vmem:[%s8 + $0xd8] sm:$0xff]
    %v1276 = vld [vmem:[%s8 + $0xe0] sm:$0xff]
    %v1277 = vld [vmem:[%s8 + $0xe8] sm:$0xff]
    %v1278 = vld [vmem:[%s8 + $0xf0] sm:$0xff]
    %v1279 = vld [vmem:[%s8 + $0xf8] sm:$0xff]
    %v1280 = vmul.f32 %v1216, %v1248
    %v1281 = vmul.f32 %v1217, %v1249
    %v1282 = vmul.f32 %v1218, %v1250
    %v1283 = vmul.f32 %v1219, %v1251
    %v1284 = vmul.f32 %v1220, %v1252
    %v1285 = vmul.f32 %v1221, %v1253
    %v1286 = vmul.f32 %v1222, %v1254
    %v1287 = vmul.f32 %v1223, %v1255
    %v1288 = vmul.f32 %v1224, %v1256
    %v1289 = vmul.f32 %v1225, %v1257
    %v1290 = vmul.f32 %v1226, %v1258
    %v1291 = vmul.f32 %v1227, %v1259
    %v1292 = vmul.f32 %v1228, %v1260
    %v1293 = vmul.f32 %v1229, %v1261
    %v1294 = vmul.f32 %v1230, %v1262
    %v1295 = vmul.f32 %v1231, %v1263
    %v1296 = vmul.f32 %v1232, %v1264
    %v1297 = vmul.f32 %v1233, %v1265
    %v1298 = vmul.f32 %v1234, %v1266
    %v1299 = vmul.f32 %v1235, %v1267
    %v1300 = vmul.f32 %v1236, %v1268
    %v1301 = vmul.f32 %v1237, %v1269
    %v1302 = vmul.f32 %v1238, %v1270
    %v1303 = vmul.f32 %v1239, %v1271
    %v1304 = vmul.f32 %v1240, %v1272
    %v1305 = vmul.f32 %v1241, %v1273
    %v1306 = vmul.f32 %v1242, %v1274
    %v1307 = vmul.f32 %v1243, %v1275
    %v1308 = vmul.f32 %v1244, %v1276
    %v1309 = vmul.f32 %v1245, %v1277
    %v1310 = vmul.f32 %v1246, %v1278
    %v1311 = vmul.f32 %v1247, %v1279
    %v1312 = vld [vmem:[%s9] sm:$0xf]
    %v1313 = vld [vmem:[%s9 + $0x4] sm:$0xf]
    %v1314 = vld [vmem:[%s9 + $0x8] sm:$0xf]
    %v1315 = vld [vmem:[%s9 + $0xc] sm:$0xf]
    %v1316 = vld [vmem:[%s9 + $0x10] sm:$0xf]
    %v1317 = vld [vmem:[%s9 + $0x14] sm:$0xf]
    %v1318 = vld [vmem:[%s9 + $0x18] sm:$0xf]
    %v1319 = vld [vmem:[%s9 + $0x1c] sm:$0xf]
    %v1320 = vld [vmem:[%s9 + $0x20] sm:$0xf]
    %v1321 = vld [vmem:[%s9 + $0x24] sm:$0xf]
    %v1322 = vld [vmem:[%s9 + $0x28] sm:$0xf]
    %v1323 = vld [vmem:[%s9 + $0x2c] sm:$0xf]
    %v1324 = vld [vmem:[%s9 + $0x30] sm:$0xf]
    %v1325 = vld [vmem:[%s9 + $0x34] sm:$0xf]
    %v1326 = vld [vmem:[%s9 + $0x38] sm:$0xf]
    %v1327 = vld [vmem:[%s9 + $0x3c] sm:$0xf]
    %v1328 = vld [vmem:[%s9 + $0x40] sm:$0xf]
    %v1329 = vld [vmem:[%s9 + $0x44] sm:$0xf]
    %v1330 = vld [vmem:[%s9 + $0x48] sm:$0xf]
    %v1331 = vld [vmem:[%s9 + $0x4c] sm:$0xf]
    %v1332 = vld [vmem:[%s9 + $0x50] sm:$0xf]
    %v1333 = vld [vmem:[%s9 + $0x54] sm:$0xf]
    %v1334 = vld [vmem:[%s9 + $0x58] sm:$0xf]
    %v1335 = vld [vmem:[%s9 + $0x5c] sm:$0xf]
    %v1336 = vld [vmem:[%s9 + $0x60] sm:$0xf]
    %v1337 = vld [vmem:[%s9 + $0x64] sm:$0xf]
    %v1338 = vld [vmem:[%s9 + $0x68] sm:$0xf]
    %v1339 = vld [vmem:[%s9 + $0x6c] sm:$0xf]
    %v1340 = vld [vmem:[%s9 + $0x70] sm:$0xf]
    %v1341 = vld [vmem:[%s9 + $0x74] sm:$0xf]
    %v1342 = vld [vmem:[%s9 + $0x78] sm:$0xf]
    %v1343 = vld [vmem:[%s9 + $0x7c] sm:$0xf]
    %v1344 = vunpack.c.l.bf16 %v1312
    %v1345 = vunpack.c.l.bf16 %v1313
    %v1346 = vunpack.c.l.bf16 %v1314
    %v1347 = vunpack.c.l.bf16 %v1315
    %v1348 = vunpack.c.l.bf16 %v1316
    %v1349 = vunpack.c.l.bf16 %v1317
    %v1350 = vunpack.c.l.bf16 %v1318
    %v1351 = vunpack.c.l.bf16 %v1319
    %v1352 = vunpack.c.l.bf16 %v1320
    %v1353 = vunpack.c.l.bf16 %v1321
    %v1354 = vunpack.c.l.bf16 %v1322
    %v1355 = vunpack.c.l.bf16 %v1323
    %v1356 = vunpack.c.l.bf16 %v1324
    %v1357 = vunpack.c.l.bf16 %v1325
    %v1358 = vunpack.c.l.bf16 %v1326
    %v1359 = vunpack.c.l.bf16 %v1327
    %v1360 = vunpack.c.l.bf16 %v1328
    %v1361 = vunpack.c.l.bf16 %v1329
    %v1362 = vunpack.c.l.bf16 %v1330
    %v1363 = vunpack.c.l.bf16 %v1331
    %v1364 = vunpack.c.l.bf16 %v1332
    %v1365 = vunpack.c.l.bf16 %v1333
    %v1366 = vunpack.c.l.bf16 %v1334
    %v1367 = vunpack.c.l.bf16 %v1335
    %v1368 = vunpack.c.l.bf16 %v1336
    %v1369 = vunpack.c.l.bf16 %v1337
    %v1370 = vunpack.c.l.bf16 %v1338
    %v1371 = vunpack.c.l.bf16 %v1339
    %v1372 = vunpack.c.l.bf16 %v1340
    %v1373 = vunpack.c.l.bf16 %v1341
    %v1374 = vunpack.c.l.bf16 %v1342
    %v1375 = vunpack.c.l.bf16 %v1343
    %1408 = vrot.lane.b32.xlu0 %v1344, 16
    %v1409 = vpop.permute.xlu0 %1408
    %1410 = vrot.lane.b32.xlu0 %v1345, 16
    %v1411 = vpop.permute.xlu0 %1410
    %1412 = vrot.lane.b32.xlu0 %v1346, 16
    %v1413 = vpop.permute.xlu0 %1412
    %1414 = vrot.lane.b32.xlu0 %v1347, 16
    %v1415 = vpop.permute.xlu0 %1414
    %1416 = vrot.lane.b32.xlu0 %v1348, 16
    %v1417 = vpop.permute.xlu0 %1416
    %1418 = vrot.lane.b32.xlu0 %v1349, 16
    %v1419 = vpop.permute.xlu0 %1418
    %1420 = vrot.lane.b32.xlu0 %v1350, 16
    %v1421 = vpop.permute.xlu0 %1420
    %1422 = vrot.lane.b32.xlu0 %v1351, 16
    %v1423 = vpop.permute.xlu0 %1422
    %1424 = vrot.lane.b32.xlu0 %v1352, 16
    %v1425 = vpop.permute.xlu0 %1424
    %1426 = vrot.lane.b32.xlu0 %v1353, 16
    %v1427 = vpop.permute.xlu0 %1426
    %1428 = vrot.lane.b32.xlu0 %v1354, 16
    %v1429 = vpop.permute.xlu0 %1428
    %1430 = vrot.lane.b32.xlu0 %v1355, 16
    %v1431 = vpop.permute.xlu0 %1430
    %1432 = vrot.lane.b32.xlu0 %v1356, 16
    %v1433 = vpop.permute.xlu0 %1432
    %1434 = vrot.lane.b32.xlu0 %v1357, 16
    %v1435 = vpop.permute.xlu0 %1434
    %1436 = vrot.lane.b32.xlu0 %v1358, 16
    %v1437 = vpop.permute.xlu0 %1436
    %1438 = vrot.lane.b32.xlu0 %v1359, 16
    %v1439 = vpop.permute.xlu0 %1438
    %1440 = vrot.lane.b32.xlu0 %v1360, 16
    %v1441 = vpop.permute.xlu0 %1440
    %1442 = vrot.lane.b32.xlu0 %v1361, 16
    %v1443 = vpop.permute.xlu0 %1442
    %1444 = vrot.lane.b32.xlu0 %v1362, 16
    %v1445 = vpop.permute.xlu0 %1444
    %1446 = vrot.lane.b32.xlu0 %v1363, 16
    %v1447 = vpop.permute.xlu0 %1446
    %1448 = vrot.lane.b32.xlu0 %v1364, 16
    %v1449 = vpop.permute.xlu0 %1448
    %1450 = vrot.lane.b32.xlu0 %v1365, 16
    %v1451 = vpop.permute.xlu0 %1450
    %1452 = vrot.lane.b32.xlu0 %v1366, 16
    %v1453 = vpop.permute.xlu0 %1452
    %1454 = vrot.lane.b32.xlu0 %v1367, 16
    %v1455 = vpop.permute.xlu0 %1454
    %1456 = vrot.lane.b32.xlu0 %v1368, 16
    %v1457 = vpop.permute.xlu0 %1456
    %1458 = vrot.lane.b32.xlu0 %v1369, 16
    %v1459 = vpop.permute.xlu0 %1458
    %1460 = vrot.lane.b32.xlu0 %v1370, 16
    %v1461 = vpop.permute.xlu0 %1460
    %1462 = vrot.lane.b32.xlu0 %v1371, 16
    %v1463 = vpop.permute.xlu0 %1462
    %1464 = vrot.lane.b32.xlu0 %v1372, 16
    %v1465 = vpop.permute.xlu0 %1464
    %1466 = vrot.lane.b32.xlu0 %v1373, 16
    %v1467 = vpop.permute.xlu0 %1466
    %1468 = vrot.lane.b32.xlu0 %v1374, 16
    %v1469 = vpop.permute.xlu0 %1468
    %1470 = vrot.lane.b32.xlu0 %v1375, 16
    %v1471 = vpop.permute.xlu0 %1470
    %vm1504 = vcmask 130048
    %v1505 = vsel %vm1504, %v1280, %v1409
    %v1506 = vsel %vm1504, %v1281, %v1411
    %v1507 = vsel %vm1504, %v1282, %v1413
    %v1508 = vsel %vm1504, %v1283, %v1415
    %v1509 = vsel %vm1504, %v1284, %v1417
    %v1510 = vsel %vm1504, %v1285, %v1419
    %v1511 = vsel %vm1504, %v1286, %v1421
    %v1512 = vsel %vm1504, %v1287, %v1423
    %v1513 = vsel %vm1504, %v1288, %v1425
    %v1514 = vsel %vm1504, %v1289, %v1427
    %v1515 = vsel %vm1504, %v1290, %v1429
    %v1516 = vsel %vm1504, %v1291, %v1431
    %v1517 = vsel %vm1504, %v1292, %v1433
    %v1518 = vsel %vm1504, %v1293, %v1435
    %v1519 = vsel %vm1504, %v1294, %v1437
    %v1520 = vsel %vm1504, %v1295, %v1439
    %v1521 = vsel %vm1504, %v1296, %v1441
    %v1522 = vsel %vm1504, %v1297, %v1443
    %v1523 = vsel %vm1504, %v1298, %v1445
    %v1524 = vsel %vm1504, %v1299, %v1447
    %v1525 = vsel %vm1504, %v1300, %v1449
    %v1526 = vsel %vm1504, %v1301, %v1451
    %v1527 = vsel %vm1504, %v1302, %v1453
    %v1528 = vsel %vm1504, %v1303, %v1455
    %v1529 = vsel %vm1504, %v1304, %v1457
    %v1530 = vsel %vm1504, %v1305, %v1459
    %v1531 = vsel %vm1504, %v1306, %v1461
    %v1532 = vsel %vm1504, %v1307, %v1463
    %v1533 = vsel %vm1504, %v1308, %v1465
    %v1534 = vsel %vm1504, %v1309, %v1467
    %v1535 = vsel %vm1504, %v1310, %v1469
    %v1536 = vsel %vm1504, %v1311, %v1471
    %v1537 = vpack.c.bf16 %v696, %v696
    %v1538 = vpack.c.bf16 %v697, %v697
    %v1539 = vpack.c.bf16 %v1506, %v1505
    %v1540 = vpack.c.bf16 %v1508, %v1507
    %v1541 = vpack.c.bf16 %v1510, %v1509
    %v1542 = vpack.c.bf16 %v1512, %v1511
    %v1543 = vpack.c.bf16 %v1514, %v1513
    %v1544 = vpack.c.bf16 %v1516, %v1515
    %v1545 = vpack.c.bf16 %v1518, %v1517
    %v1546 = vpack.c.bf16 %v1520, %v1519
    %v1547 = vpack.c.bf16 %v1522, %v1521
    %v1548 = vpack.c.bf16 %v1524, %v1523
    %v1549 = vpack.c.bf16 %v1526, %v1525
    %v1550 = vpack.c.bf16 %v1528, %v1527
    %v1551 = vpack.c.bf16 %v1530, %v1529
    %v1552 = vpack.c.bf16 %v1532, %v1531
    %v1553 = vpack.c.bf16 %v1534, %v1533
    %v1554 = vpack.c.bf16 %v1536, %v1535
    %v1555 = vld [vmem:[%s10] sm:$0x1]
    %v1557 = vlaneseq
    %v1558 = vshrl.u32 %v1557, 7
    %v1559 = vsub.s32 0, %v1558
    %v1560 = vrot.slane %v1555, %v1559
    %1562 = vmatprep.subr.bf16.mxu0 0
    %1563 = vmatpush1.bf16.msra.mxu0 %v1539
    %1564 = vmatprep.subr.bf16.mxu0 0
    %1565 = vmatpush1.bf16.msra.mxu0 %v1540
    %1566 = vmatprep.subr.bf16.mxu0 0
    %1567 = vmatpush1.bf16.msra.mxu0 %v1541
    %1568 = vmatprep.subr.bf16.mxu0 0
    %1569 = vmatpush1.bf16.msra.mxu0 %v1542
    %1570 = vmatprep.subr.bf16.mxu0 0
    %1571 = vmatpush1.bf16.msra.mxu0 %v1543
    %1572 = vmatprep.subr.bf16.mxu0 0
    %1573 = vmatpush1.bf16.msra.mxu0 %v1544
    %1574 = vmatprep.subr.bf16.mxu0 0
    %1575 = vmatpush1.bf16.msra.mxu0 %v1545
    %1576 = vmatprep.subr.bf16.mxu0 0
    %1577 = vmatpush1.bf16.msra.mxu0 %v1546
    %1578 = vmatprep.subr.bf16.mxu0 0
    %1579 = vmatpush1.bf16.msra.mxu0 %v1547
    %1580 = vmatprep.subr.bf16.mxu0 0
    %1581 = vmatpush1.bf16.msra.mxu0 %v1548
    %1582 = vmatprep.subr.bf16.mxu0 0
    %1583 = vmatpush1.bf16.msra.mxu0 %v1549
    %1584 = vmatprep.subr.bf16.mxu0 0
    %1585 = vmatpush1.bf16.msra.mxu0 %v1550
    %1586 = vmatprep.subr.bf16.mxu0 0
    %1587 = vmatpush1.bf16.msra.mxu0 %v1551
    %1588 = vmatprep.subr.bf16.mxu0 0
    %1589 = vmatpush1.bf16.msra.mxu0 %v1552
    %1590 = vmatprep.subr.bf16.mxu0 0
    %1591 = vmatpush1.bf16.msra.mxu0 %v1553
    %1592 = vmatprep.subr.bf16.mxu0 0
    %1593 = vmatpush1.bf16.msra.mxu0 %v1554
    %1594 = vmatprep.mubr.bf16.mxu0 %v1538
    %1595 = vmatmul.mubr.bf16.gmra.mrb[0].mxu0 %v1537
    %v1596 = vpop.f32.mrb[0].mxu0
    %v1597 = vadd.f32 %v1560, %v1596
    %v1598 = vpop.f32.mrb[0].mxu0
    %v1599 = vpop.f32.mrb[0].mxu0
    %v1600 = vpop.f32.mrb[0].mxu0
    %1601 = vdwg.mxu0
    %1602 = vst [vmem:[#allocation2] sm:$0xff] %v1597
    // Predicated region
    $region46: #{tpu_custom_call.1} parent=1 // pred_check
      _
    $region47: #{tpu_custom_call.1} parent=1 // pred_check_branch
      %1604 = sbr.rel (0) target = $region49
    $region48: #{tpu_custom_call.1} parent=1 // pred_region
      %s1606 = ssub.s32 128, 128
      %1607 = vsyncadd [#allocation3], %s1606
      %s1609 = sshll.u32 [#allocation2], 4
      %s1610 = int_to_ptr.vmem [resolvable:$true] %s1609
      %1612 = dma.vmem_to_hbm [thread:$0]  %s1610, 128, %s11, [#allocation3]
    $region49: #{tpu_custom_call.1} parent=1 // pred_fallthru
      _
    // Predicated region
    $region50: #{tpu_custom_call.1} parent=1 // pred_check
      _
    $region51: #{tpu_custom_call.1} parent=1 // pred_check_branch
      %1614 = sbr.rel (0) target = $region53
    $region52: #{tpu_custom_call.1} parent=1 // pred_region
      %1615 = dma.done [#allocation3], 128
    $region53: #{tpu_custom_call.1} parent=1 // pred_fallthru
      _
    %1616 = vsyncpa [#allocation3], 1

</llo_original>
